<compile_context>
chip_gen: v7x
topology: tpu7x:2x2x1
jax: 0.10.0
libtpu: 0.0.40
codegen_flags: <defaults>
</compile_context>

<pallas_src>
import jax
import jax.numpy as jnp
from jax import lax
from jax.experimental import pallas as pl
from jax.experimental.pallas import tpu as pltpu

EPS = 1e-5


def _vmem_limit_bytes():
    """Explicit scoped-VMEM limit: ~3/4 of physical, capped at 100 MiB."""
    try:
        cap = pltpu.get_tpu_info().vmem_capacity_bytes
    except Exception:
        cap = 64 * 1024 * 1024  # conservative fallback (v7x per-TC VMEM)
    return int(min(cap * 3 // 4, 100 * 1024 * 1024))


def conv_1_forward(x_nchw, params, out_dtype=jnp.float32):
    """x_nchw: (N, Cin, H, W) float32. Returns (N, L, H, W) out_dtype.

    out_dtype defaults to float32 to match the PyTorch module; pass
    jnp.bfloat16 if the consumer tolerates it (halves the dominant output
    HBM stream, biggest relative win on v5e).
    """
    w1, b1, w2, b2, w3, b3 = params
    del b1, b2  # exactly cancelled by the following no-affine InstanceNorm2d
    N, Cin, H, W = x_nchw.shape
    L = w1.shape[0]
    P = H * W
    inv_p = 1.0 / float(P)
    out_bytes = jnp.dtype(out_dtype).itemsize

    vmem_limit = _vmem_limit_bytes()

    # Per-step VMEM working set (conservative: all BN iterations' f32
    # intermediates + their bf16 copies counted live, true when unrolled).
    def step_bytes(bn):
        x_blk = 2 * bn * Cin * P * 4                    # double-buffered f32 in
        o_blk = 2 * bn * L * P * out_bytes              # double-buffered out
        tmps = bn * (3 * L * P * 4 + 2 * L * P * 2)     # f32 interm. + bf16 copies
        wts = 2 * ((L * Cin + 2 * L * L) * 2 + L * 4)   # bf16 weights + f32 b3
        return x_blk + o_blk + tmps + wts

    # Largest BN dividing N that fits the VMEM budget while leaving at least
    # min(N, 4) grid steps: overlaps input/output DMA with compute and keeps
    # both v7x TensorCores busy (N=2 -> BN=1, grid=2).
    target_steps = min(N, 4)
    BN = max(1, N // target_steps)
    while BN > 1 and (N % BN != 0 or step_bytes(BN) > vmem_limit // 2):
        BN -= 1
    unroll = BN <= 4

    x = x_nchw.reshape(N, Cin, P)            # contiguous collapse: no HBM pass
    w1b = w1.astype(jnp.bfloat16)            # weights are tiny; wrapper cast ok
    w2b = w2.astype(jnp.bfloat16)
    w3b = w3.astype(jnp.bfloat16)
    b3f = b3.astype(jnp.float32)

    def kernel(x_ref, w1_ref, w2_ref, w3_ref, b3_ref, o_ref):
        w1v = w1_ref[...]
        w2v = w2_ref[...]
        w3v = w3_ref[...]
        b3v = b3_ref[...]

        def inorm_relu(h):
            # PyTorch InstanceNorm2d (no affine): biased var, eps inside sqrt.
            # Shifted single-pass stats: subtract a per-channel reference value
            # first so var = E[d^2] - E[d]^2 does not cancel catastrophically.
            c = h[:, :1]
            d = h - c
            s = jnp.sum(d, axis=-1, keepdims=True)
            s2 = jnp.sum(d * d, axis=-1, keepdims=True)
            mean_d = s * inv_p
            var = jnp.maximum(s2 * inv_p - mean_d * mean_d, 0.0)
            return jnp.maximum((d - mean_d) * lax.rsqrt(var + EPS), 0.0)

        def body(b, carry):
            # f32 is DMA'd; cast to bf16 on the VPU, hidden under the matmul.
            xi = x_ref[b].astype(jnp.bfloat16)                 # (Cin, P)
            h1 = inorm_relu(jnp.dot(w1v, xi,
                                    preferred_element_type=jnp.float32))
            h2 = inorm_relu(jnp.dot(w2v, h1.astype(jnp.bfloat16),
                                    preferred_element_type=jnp.float32))
            h3 = jnp.dot(w3v, h2.astype(jnp.bfloat16),
                         preferred_element_type=jnp.float32) + b3v
            o_ref[b] = h3.astype(o_ref.dtype)
            return carry

        # fori_loop bounds live ranges across batch elements (a static Python
        # for would keep every iteration's f32 intermediates live at once).
        lax.fori_loop(0, BN, body, 0, unroll=unroll)

    flops = int(2 * N * P * (L * Cin + 2 * L * L) + 12 * N * L * P)
    bytes_accessed = int(N * Cin * P * 4 + N * L * P * out_bytes
                         + (w1b.size + w2b.size + w3b.size) * 2 + b3f.size * 4)
    cost = pl.CostEstimate(flops=flops,
                           transcendentals=int(2 * N * L),
                           bytes_accessed=bytes_accessed)

    # NOTE: the weight BlockSpecs have constant index maps; pipeline_mode=
    # pl.Buffered(1) would skip their double-buffering, but the saving is
    # negligible at this L so the default (lowest-risk) mode is kept.
    out = pl.pallas_call(
        kernel,
        out_shape=jax.ShapeDtypeStruct((N, L, P), out_dtype),
        grid_spec=pltpu.PrefetchScalarGridSpec(
            num_scalar_prefetch=0,
            grid=(N // BN,),
            in_specs=[
                pl.BlockSpec((BN, Cin, P), lambda n: (n, 0, 0)),
                pl.BlockSpec((L, Cin), lambda n: (0, 0)),
                pl.BlockSpec((L, L), lambda n: (0, 0)),
                pl.BlockSpec((L, L), lambda n: (0, 0)),
                pl.BlockSpec((L, 1), lambda n: (0, 0)),
            ],
            out_specs=pl.BlockSpec((BN, L, P), lambda n: (n, 0, 0)),
        ),
        compiler_params=pltpu.CompilerParams(
            dimension_semantics=("parallel",),
            vmem_limit_bytes=vmem_limit,
        ),
        cost_estimate=cost,
    )(x, w1b, w2b, w3b, b3f)

    return out.reshape(N, L, H, W)


def make_params(key, input_dim, latent_dim):
    """Deterministic Xavier-normal 1x1 conv weights, zero biases."""
    k1, k2, k3 = jax.random.split(key, 3)

    def xavier(k, fan_out, fan_in):
        std = (2.0 / (fan_in + fan_out)) ** 0.5
        return std * jax.random.normal(k, (fan_out, fan_in), dtype=jnp.float32)

    w1 = xavier(k1, latent_dim, input_dim)
    w2 = xavier(k2, latent_dim, latent_dim)
    w3 = xavier(k3, latent_dim, latent_dim)
    b1 = jnp.zeros((latent_dim, 1), jnp.float32)
    b2 = jnp.zeros((latent_dim, 1), jnp.float32)
    b3 = jnp.zeros((latent_dim, 1), jnp.float32)
    return (w1, b1, w2, b2, w3, b3)


def reference_forward(x_nchw, params):
    """Pure-JAX f32 reference of the PyTorch forward (sanity check)."""
    w1, b1, w2, b2, w3, b3 = params
    N, Cin, H, W = x_nchw.shape
    x = x_nchw.reshape(N, Cin, H * W)

    def conv(x, w, b):  # (N,C,P) x (O,C) -> (N,O,P)
        return jnp.einsum("oc,ncp->nop", w, x) + b[None, :, :]

    def inorm_relu(h):
        mean = jnp.mean(h, axis=-1, keepdims=True)
        var = jnp.mean((h - mean) ** 2, axis=-1, keepdims=True)
        return jnp.maximum((h - mean) / jnp.sqrt(var + EPS), 0.0)

    h = inorm_relu(conv(x, w1, b1))
    h = inorm_relu(conv(h, w2, b2))
    h = conv(h, w3, b3)
    return h.reshape(N, -1, H, W)


if __name__ == "__main__":
    key = jax.random.PRNGKey(0)
    kx, kp = jax.random.split(key)

    N, Cin, H, W = 2, 4, 16, 16
    latent_dim = 32

    x = jax.random.normal(kx, (N, Cin, H, W), dtype=jnp.float32)
    params = make_params(kp, Cin, latent_dim)

    out = conv_1_forward(x, params)
    out = jax.block_until_ready(out)

    ref = reference_forward(x, params)
    assert out.shape == (N, latent_dim, H, W)
    # bf16 matmul inputs shift results within normal fp tolerance.
    assert jnp.allclose(out, ref, atol=5e-2, rtol=5e-2)

    print("KERNEL_OK")
</pallas_src>

<mosaic_0001>
module attributes {stable_mosaic.version = 11 : i64} {
  func.func @kernel(%arg0: i32, %arg1: memref<1x4x256xf32, #tpu.memory_space<vmem>>, %arg2: memref<32x4xbf16, #tpu.memory_space<vmem>>, %arg3: memref<32x32xbf16, #tpu.memory_space<vmem>>, %arg4: memref<32x32xbf16, #tpu.memory_space<vmem>>, %arg5: memref<32x1xf32, #tpu.memory_space<vmem>>, %arg6: memref<1x32x256xf32, #tpu.memory_space<vmem>>) attributes {dimension_semantics = [#tpu.dimension_semantics<parallel>], iteration_bounds = array<i64: 2>, scalar_prefetch = 0 : i64, scratch_operands = 0 : i64, tpu.core_type = #tpu.core_type<tc>, window_params = [{transform_indices = @transform_0, window_bounds = array<i64: 1, 4, 256>}, {pipeline_mode = #tpu.pipeline_mode<synchronous>, transform_indices = @transform_1, window_bounds = array<i64: 32, 4>}, {pipeline_mode = #tpu.pipeline_mode<synchronous>, transform_indices = @transform_2, window_bounds = array<i64: 32, 32>}, {pipeline_mode = #tpu.pipeline_mode<synchronous>, transform_indices = @transform_3, window_bounds = array<i64: 32, 32>}, {pipeline_mode = #tpu.pipeline_mode<synchronous>, transform_indices = @transform_4, window_bounds = array<i64: 32, 1>}, {transform_indices = @transform_5, window_bounds = array<i64: 1, 32, 256>}]} {
    %c0 = arith.constant 0 : index
    %c0_0 = arith.constant 0 : index
    %0 = vector.load %arg2[%c0, %c0_0] : memref<32x4xbf16, #tpu.memory_space<vmem>>, vector<32x4xbf16>
    %c0_1 = arith.constant 0 : index
    %c0_2 = arith.constant 0 : index
    %1 = vector.load %arg3[%c0_1, %c0_2] : memref<32x32xbf16, #tpu.memory_space<vmem>>, vector<32x32xbf16>
    %c0_3 = arith.constant 0 : index
    %c0_4 = arith.constant 0 : index
    %2 = vector.load %arg4[%c0_3, %c0_4] : memref<32x32xbf16, #tpu.memory_space<vmem>>, vector<32x32xbf16>
    %c0_5 = arith.constant 0 : index
    %c0_6 = arith.constant 0 : index
    %3 = vector.load %arg5[%c0_5, %c0_6] : memref<32x1xf32, #tpu.memory_space<vmem>>, vector<32x1xf32>
    %c0_i32 = arith.constant 0 : i32
    %4 = arith.index_cast %c0_i32 : i32 to index
    %c0_7 = arith.constant 0 : index
    %c0_8 = arith.constant 0 : index
    %5 = vector.load %arg1[%4, %c0_7, %c0_8] : memref<1x4x256xf32, #tpu.memory_space<vmem>>, vector<1x4x256xf32>
    %6 = vector.shape_cast %5 : vector<1x4x256xf32> to vector<4x256xf32>
    %7 = arith.truncf %6 : vector<4x256xf32> to vector<4x256xbf16>
    %cst = arith.constant dense<0.000000e+00> : vector<32x256xf32>
    %8 = tpu.matmul %0, %7, %cst {dimension_numbers = #tpu.dot_dimension_numbers<[1], [0], [0], [1], [0, 0, 1, 1], [], []>} : vector<32x4xbf16>, vector<4x256xbf16>, vector<32x256xf32> -> vector<32x256xf32>
    %9 = vector.extract_strided_slice %8 {offsets = [0, 0], sizes = [32, 1], strides = [1, 1]} : vector<32x256xf32> to vector<32x1xf32>
    %10 = vector.broadcast %9 : vector<32x1xf32> to vector<32x256xf32>
    %11 = arith.subf %8, %10 : vector<32x256xf32>
    %cst_9 = arith.constant dense<0.000000e+00> : vector<32xf32>
    %12 = vector.multi_reduction <add>, %11, %cst_9 [1] : vector<32x256xf32> to vector<32xf32>
    %13 = vector.shape_cast %12 : vector<32xf32> to vector<32x1xf32>
    %14 = arith.mulf %11, %11 : vector<32x256xf32>
    %cst_10 = arith.constant dense<0.000000e+00> : vector<32xf32>
    %15 = vector.multi_reduction <add>, %14, %cst_10 [1] : vector<32x256xf32> to vector<32xf32>
    %16 = vector.shape_cast %15 : vector<32xf32> to vector<32x1xf32>
    %cst_11 = arith.constant 3.906250e-03 : f32
    %17 = vector.broadcast %cst_11 : f32 to vector<32x1xf32>
    %18 = arith.mulf %13, %17 : vector<32x1xf32>
    %cst_12 = arith.constant 3.906250e-03 : f32
    %19 = vector.broadcast %cst_12 : f32 to vector<32x1xf32>
    %20 = arith.mulf %16, %19 : vector<32x1xf32>
    %21 = arith.mulf %18, %18 : vector<32x1xf32>
    %22 = arith.subf %20, %21 : vector<32x1xf32>
    %cst_13 = arith.constant 0.000000e+00 : f32
    %23 = vector.broadcast %cst_13 : f32 to vector<32x1xf32>
    %24 = arith.maximumf %22, %23 : vector<32x1xf32>
    %25 = vector.broadcast %18 : vector<32x1xf32> to vector<32x256xf32>
    %26 = arith.subf %11, %25 : vector<32x256xf32>
    %cst_14 = arith.constant 9.99999974E-6 : f32
    %27 = vector.broadcast %cst_14 : f32 to vector<32x1xf32>
    %28 = arith.addf %24, %27 : vector<32x1xf32>
    %29 = math.rsqrt %28 : vector<32x1xf32>
    %30 = vector.broadcast %29 : vector<32x1xf32> to vector<32x256xf32>
    %31 = arith.mulf %26, %30 : vector<32x256xf32>
    %cst_15 = arith.constant 0.000000e+00 : f32
    %32 = vector.broadcast %cst_15 : f32 to vector<32x256xf32>
    %33 = arith.maximumf %31, %32 : vector<32x256xf32>
    %34 = arith.truncf %33 : vector<32x256xf32> to vector<32x256xbf16>
    %cst_16 = arith.constant dense<0.000000e+00> : vector<32x256xf32>
    %35 = tpu.matmul %1, %34, %cst_16 {dimension_numbers = #tpu.dot_dimension_numbers<[1], [0], [0], [1], [0, 0, 1, 1], [], []>} : vector<32x32xbf16>, vector<32x256xbf16>, vector<32x256xf32> -> vector<32x256xf32>
    %36 = vector.extract_strided_slice %35 {offsets = [0, 0], sizes = [32, 1], strides = [1, 1]} : vector<32x256xf32> to vector<32x1xf32>
    %37 = vector.broadcast %36 : vector<32x1xf32> to vector<32x256xf32>
    %38 = arith.subf %35, %37 : vector<32x256xf32>
    %cst_17 = arith.constant dense<0.000000e+00> : vector<32xf32>
    %39 = vector.multi_reduction <add>, %38, %cst_17 [1] : vector<32x256xf32> to vector<32xf32>
    %40 = vector.shape_cast %39 : vector<32xf32> to vector<32x1xf32>
    %41 = arith.mulf %38, %38 : vector<32x256xf32>
    %cst_18 = arith.constant dense<0.000000e+00> : vector<32xf32>
    %42 = vector.multi_reduction <add>, %41, %cst_18 [1] : vector<32x256xf32> to vector<32xf32>
    %43 = vector.shape_cast %42 : vector<32xf32> to vector<32x1xf32>
    %cst_19 = arith.constant 3.906250e-03 : f32
    %44 = vector.broadcast %cst_19 : f32 to vector<32x1xf32>
    %45 = arith.mulf %40, %44 : vector<32x1xf32>
    %cst_20 = arith.constant 3.906250e-03 : f32
    %46 = vector.broadcast %cst_20 : f32 to vector<32x1xf32>
    %47 = arith.mulf %43, %46 : vector<32x1xf32>
    %48 = arith.mulf %45, %45 : vector<32x1xf32>
    %49 = arith.subf %47, %48 : vector<32x1xf32>
    %cst_21 = arith.constant 0.000000e+00 : f32
    %50 = vector.broadcast %cst_21 : f32 to vector<32x1xf32>
    %51 = arith.maximumf %49, %50 : vector<32x1xf32>
    %52 = vector.broadcast %45 : vector<32x1xf32> to vector<32x256xf32>
    %53 = arith.subf %38, %52 : vector<32x256xf32>
    %cst_22 = arith.constant 9.99999974E-6 : f32
    %54 = vector.broadcast %cst_22 : f32 to vector<32x1xf32>
    %55 = arith.addf %51, %54 : vector<32x1xf32>
    %56 = math.rsqrt %55 : vector<32x1xf32>
    %57 = vector.broadcast %56 : vector<32x1xf32> to vector<32x256xf32>
    %58 = arith.mulf %53, %57 : vector<32x256xf32>
    %cst_23 = arith.constant 0.000000e+00 : f32
    %59 = vector.broadcast %cst_23 : f32 to vector<32x256xf32>
    %60 = arith.maximumf %58, %59 : vector<32x256xf32>
    %61 = arith.truncf %60 : vector<32x256xf32> to vector<32x256xbf16>
    %cst_24 = arith.constant dense<0.000000e+00> : vector<32x256xf32>
    %62 = tpu.matmul %2, %61, %cst_24 {dimension_numbers = #tpu.dot_dimension_numbers<[1], [0], [0], [1], [0, 0, 1, 1], [], []>} : vector<32x32xbf16>, vector<32x256xbf16>, vector<32x256xf32> -> vector<32x256xf32>
    %63 = vector.broadcast %3 : vector<32x1xf32> to vector<32x256xf32>
    %64 = arith.addf %62, %63 : vector<32x256xf32>
    %65 = arith.index_cast %c0_i32 : i32 to index
    %c0_25 = arith.constant 0 : index
    %c0_26 = arith.constant 0 : index
    %66 = vector.load %arg6[%65, %c0_25, %c0_26] : memref<1x32x256xf32, #tpu.memory_space<vmem>>, vector<1x32x256xf32>
    %67 = vector.shape_cast %66 : vector<1x32x256xf32> to vector<32x256xf32>
    %68 = vector.shape_cast %64 : vector<32x256xf32> to vector<1x32x256xf32>
    tpu.vector_store %arg6[%65, %c0_25, %c0_26], %68 {strides = array<i32>} : memref<1x32x256xf32, #tpu.memory_space<vmem>>, vector<1x32x256xf32>,
    %c1_i32 = arith.constant 1 : i32
    return
  }
  func.func @transform_0(%arg0: i32) -> (i32, i32, i32) {
    %c0_i32 = arith.constant 0 : i32
    %c0_i32_0 = arith.constant 0 : i32
    %c0_i32_1 = arith.constant 0 : i32
    return %arg0, %c0_i32, %c0_i32_0 : i32, i32, i32
  }
  func.func @transform_1(%arg0: i32) -> (i32, i32) {
    %c0_i32 = arith.constant 0 : i32
    %c0_i32_0 = arith.constant 0 : i32
    %c0_i32_1 = arith.constant 0 : i32
    return %c0_i32, %c0_i32_0 : i32, i32
  }
  func.func @transform_2(%arg0: i32) -> (i32, i32) {
    %c0_i32 = arith.constant 0 : i32
    %c0_i32_0 = arith.constant 0 : i32
    %c0_i32_1 = arith.constant 0 : i32
    return %c0_i32, %c0_i32_0 : i32, i32
  }
  func.func @transform_3(%arg0: i32) -> (i32, i32) {
    %c0_i32 = arith.constant 0 : i32
    %c0_i32_0 = arith.constant 0 : i32
    %c0_i32_1 = arith.constant 0 : i32
    return %c0_i32, %c0_i32_0 : i32, i32
  }
  func.func @transform_4(%arg0: i32) -> (i32, i32) {
    %c0_i32 = arith.constant 0 : i32
    %c0_i32_0 = arith.constant 0 : i32
    %c0_i32_1 = arith.constant 0 : i32
    return %c0_i32, %c0_i32_0 : i32, i32
  }
  func.func @transform_5(%arg0: i32) -> (i32, i32, i32) {
    %c0_i32 = arith.constant 0 : i32
    %c0_i32_0 = arith.constant 0 : i32
    %c0_i32_1 = arith.constant 0 : i32
    return %arg0, %c0_i32, %c0_i32_0 : i32, i32, i32
  }
}

</mosaic_0001>

<llo_original>
// kernel: tpu_custom_call.1
$region0: #{tpu_custom_call.1}
  #allocation0 [shape = 'u32[]', space=smem, size = 0x4, offset = 0x4, fixed_abs, tag = 'smem constant byte address 0x4 - core index']
  #allocation1 [shape = 'u32[144,128]{1,0:T(1,128)}', space=vmem, size = 0x12000, scoped, tag = 'internal scratch']
  %s0 = inlined_call_operand.vmem [shape: f32[2,4,256], index: 0, kind: input, shape index: {}]
  %s1 = inlined_call_operand.vmem [shape: bf16[32,4], index: 1, kind: input, shape index: {}]
  %s2 = inlined_call_operand.vmem [shape: bf16[32,32], index: 2, kind: input, shape index: {}]
  %s3 = inlined_call_operand.vmem [shape: bf16[32,32], index: 3, kind: input, shape index: {}]
  %s4 = inlined_call_operand.vmem [shape: f32[32,1], index: 4, kind: input, shape index: {}]
  %s5 = inlined_call_operand.hbm [shape: f32[2,32,256], index: 5, kind: output, shape index: {}]
  %s6 = sld [smem:[#allocation0]]
  $region53: #{tpu_custom_call.1} parent=0
    _
  %s8 = ssub.s32 1, %s6
  %s9 = scalar_select 0, %s8, %s6
  $region1: #{tpu_custom_call.1} parent=0
    #allocation2 [shape = 'u8[65536]{0}', space=vmem, size = 0x10000, scoped, tag = 'output window, operand 0']
    #allocation3 [shape = 's32[2]{0}', space=sflag, size = 0x8, scoped, tag = 'scoped memory for tpu_custom_call.1']
    %10 = vsyncpa [#allocation3], 0
    %s11 = scalar_lea.sflag [#allocation3], 1
    %12 = vsyncpa %s11, 0
    loop: start=0, step=1, limit=4
    $region2: #{tpu_custom_call.1} parent=1 // loop_pre_header
      _
    $region3: #{tpu_custom_call.1} parent=1 // loop_header
      %s14 = sphi 0, %s18
      %p15 = scmp.ge.s32.totalorder %s14, 4
      %s24 = sphi 0, %s26
      %s27 = sphi 0, %s24
      %s28 = sphi 0, %s27
      %s44 = sphi 0, %s28
      %s48 = sphi 0, %s48
      %s50 = sphi 0, %s48
      %s51 = sphi 0, %s50
      %s65 = sphi 0, %s51
      %s69 = sphi 0, %s69
      %s71 = sphi 0, %s69
      %s72 = sphi 0, %s71
      %s86 = sphi 0, %s72
      %s90 = sphi 0, %s90
      %s92 = sphi 0, %s90
      %s93 = sphi 0, %s92
      %s107 = sphi 0, %s93
      %s111 = sphi 0, %s111
      %s113 = sphi 0, %s111
      %s114 = sphi 0, %s113
      %s128 = sphi 0, %s114
      %s134 = sphi 0, %s136
      %s137 = sphi 0, %s134
      %s138 = sphi 0, %s137
      %s154 = sphi 0, %s138
    $region4: #{tpu_custom_call.1} parent=1 // loop_header_branch
      %17 = sbr.rel (%p15) target = $region8
    $region5: #{tpu_custom_call.1} parent=1 // loop_body
      %s19 = ssub.s32 %s14, 1
      %s20 = ssub.s32 %s14, 2
      %s21 = sadd.s32 %s14, 1
      %s22 = ssub.s32 %s14, %s21
      %p23 = scmp.eq.s32.totalorder %s22, 0
      %s25 = sadd.s32 %s24, 1
      %s26 = scalar_select %p23, %s24, %s25
      %p29 = pneg %p23
      %p30 = scmp.eq.s32.totalorder %s14, 1
      %p31 = por %p29, %p30
      %p32 = scmp.ne.s32.totalorder %s24, %s27
      %p33 = scmp.eq.s32.totalorder %s14, 0
      %p34 = por %p32, %p33
      %p35 = scmp.ne.s32.totalorder %s24, %s27
      %p36 = scmp.eq.s32.totalorder %s19, 1
      %p37 = por %p35, %p36
      %p38 = scmp.ne.s32.totalorder %s27, %s28
      %p39 = scmp.eq.s32.totalorder %s19, 0
      %p40 = por %p38, %p39
      %p41 = scmp.ne.s32.totalorder %s27, %s28
      %p42 = scmp.eq.s32.totalorder %s20, 1
      %p43 = por %p41, %p42
      %p45 = scmp.ne.s32.totalorder %s28, %s44
      %p46 = scmp.eq.s32.totalorder %s20, 0
      %p47 = por %p45, %p46
      %s49 = sadd.s32 %s48, 1
      %p52 = scmp.eq.s32.totalorder %s14, 1
      %p53 = scmp.ne.s32.totalorder %s48, %s50
      %p54 = scmp.eq.s32.totalorder %s14, 0
      %p55 = por %p53, %p54
      %p56 = scmp.ne.s32.totalorder %s48, %s50
      %p57 = scmp.eq.s32.totalorder %s19, 1
      %p58 = por %p56, %p57
      %p59 = scmp.ne.s32.totalorder %s50, %s51
      %p60 = scmp.eq.s32.totalorder %s19, 0
      %p61 = por %p59, %p60
      %p62 = scmp.ne.s32.totalorder %s50, %s51
      %p63 = scmp.eq.s32.totalorder %s20, 1
      %p64 = por %p62, %p63
      %p66 = scmp.ne.s32.totalorder %s51, %s65
      %p67 = scmp.eq.s32.totalorder %s20, 0
      %p68 = por %p66, %p67
      %s70 = sadd.s32 %s69, 1
      %p73 = scmp.eq.s32.totalorder %s14, 1
      %p74 = scmp.ne.s32.totalorder %s69, %s71
      %p75 = scmp.eq.s32.totalorder %s14, 0
      %p76 = por %p74, %p75
      %p77 = scmp.ne.s32.totalorder %s69, %s71
      %p78 = scmp.eq.s32.totalorder %s19, 1
      %p79 = por %p77, %p78
      %p80 = scmp.ne.s32.totalorder %s71, %s72
      %p81 = scmp.eq.s32.totalorder %s19, 0
      %p82 = por %p80, %p81
      %p83 = scmp.ne.s32.totalorder %s71, %s72
      %p84 = scmp.eq.s32.totalorder %s20, 1
      %p85 = por %p83, %p84
      %p87 = scmp.ne.s32.totalorder %s72, %s86
      %p88 = scmp.eq.s32.totalorder %s20, 0
      %p89 = por %p87, %p88
      %s91 = sadd.s32 %s90, 1
      %p94 = scmp.eq.s32.totalorder %s14, 1
      %p95 = scmp.ne.s32.totalorder %s90, %s92
      %p96 = scmp.eq.s32.totalorder %s14, 0
      %p97 = por %p95, %p96
      %p98 = scmp.ne.s32.totalorder %s90, %s92
      %p99 = scmp.eq.s32.totalorder %s19, 1
      %p100 = por %p98, %p99
      %p101 = scmp.ne.s32.totalorder %s92, %s93
      %p102 = scmp.eq.s32.totalorder %s19, 0
      %p103 = por %p101, %p102
      %p104 = scmp.ne.s32.totalorder %s92, %s93
      %p105 = scmp.eq.s32.totalorder %s20, 1
      %p106 = por %p104, %p105
      %p108 = scmp.ne.s32.totalorder %s93, %s107
      %p109 = scmp.eq.s32.totalorder %s20, 0
      %p110 = por %p108, %p109
      %s112 = sadd.s32 %s111, 1
      %p115 = scmp.eq.s32.totalorder %s14, 1
      %p116 = scmp.ne.s32.totalorder %s111, %s113
      %p117 = scmp.eq.s32.totalorder %s14, 0
      %p118 = por %p116, %p117
      %p119 = scmp.ne.s32.totalorder %s111, %s113
      %p120 = scmp.eq.s32.totalorder %s19, 1
      %p121 = por %p119, %p120
      %p122 = scmp.ne.s32.totalorder %s113, %s114
      %p123 = scmp.eq.s32.totalorder %s19, 0
      %p124 = por %p122, %p123
      %p125 = scmp.ne.s32.totalorder %s113, %s114
      %p126 = scmp.eq.s32.totalorder %s20, 1
      %p127 = por %p125, %p126
      %p129 = scmp.ne.s32.totalorder %s114, %s128
      %p130 = scmp.eq.s32.totalorder %s20, 0
      %p131 = por %p129, %p130
      %s132 = ssub.s32 %s14, %s21
      %p133 = scmp.eq.s32.totalorder %s132, 0
      %s135 = sadd.s32 %s134, 1
      %s136 = scalar_select %p133, %s134, %s135
      %p139 = pneg %p133
      %p140 = scmp.eq.s32.totalorder %s14, 1
      %p141 = por %p139, %p140
      %p142 = scmp.ne.s32.totalorder %s134, %s137
      %p143 = scmp.eq.s32.totalorder %s14, 0
      %p144 = por %p142, %p143
      %p145 = scmp.ne.s32.totalorder %s134, %s137
      %p146 = scmp.eq.s32.totalorder %s19, 1
      %p147 = por %p145, %p146
      %p148 = scmp.ne.s32.totalorder %s137, %s138
      %p149 = scmp.eq.s32.totalorder %s19, 0
      %p150 = por %p148, %p149
      %p151 = scmp.ne.s32.totalorder %s137, %s138
      %p152 = scmp.eq.s32.totalorder %s20, 1
      %p153 = por %p151, %p152
      %p155 = scmp.ne.s32.totalorder %s138, %s154
      %p156 = scmp.eq.s32.totalorder %s20, 0
      %p157 = por %p155, %p156
      %p158 = scmp.le.s32.totalorder 1, %s14
      %p159 = scmp.lt.s32.totalorder %s14, 3
      %p160 = pnand %p158, %p159
      %p161 = pneg %p160
      // Predicated region
      $region9: #{tpu_custom_call.1} parent=5 // pred_check
        _
      $region10: #{tpu_custom_call.1} parent=5 // pred_check_branch
        %163 = sbr.rel (%p160) target = $region12
      $region11: #{tpu_custom_call.1} parent=5 // pred_region
        %s164 = ssub.s32 %s14, 1
        // Predicated region
        $region13: #{tpu_custom_call.1} parent=11 // pred_check
          %p165 = pneg %p61
        $region14: #{tpu_custom_call.1} parent=11 // pred_check_branch
          %167 = sbr.rel (%p165) target = $region16
        $region15: #{tpu_custom_call.1} parent=11 // pred_region
          _
        $region16: #{tpu_custom_call.1} parent=11 // pred_fallthru
          _
        // Predicated region
        $region17: #{tpu_custom_call.1} parent=11 // pred_check
          %p168 = pneg %p82
        $region18: #{tpu_custom_call.1} parent=11 // pred_check_branch
          %170 = sbr.rel (%p168) target = $region20
        $region19: #{tpu_custom_call.1} parent=11 // pred_region
          _
        $region20: #{tpu_custom_call.1} parent=11 // pred_fallthru
          _
        // Predicated region
        $region21: #{tpu_custom_call.1} parent=11 // pred_check
          %p171 = pneg %p103
        $region22: #{tpu_custom_call.1} parent=11 // pred_check_branch
          %173 = sbr.rel (%p171) target = $region24
        $region23: #{tpu_custom_call.1} parent=11 // pred_region
          _
        $region24: #{tpu_custom_call.1} parent=11 // pred_fallthru
          _
        // Predicated region
        $region25: #{tpu_custom_call.1} parent=11 // pred_check
          %p174 = pneg %p124
        $region26: #{tpu_custom_call.1} parent=11 // pred_check_branch
          %176 = sbr.rel (%p174) target = $region28
        $region27: #{tpu_custom_call.1} parent=11 // pred_region
          _
        $region28: #{tpu_custom_call.1} parent=11 // pred_fallthru
          _
      $region12: #{tpu_custom_call.1} parent=5 // pred_fallthru
        _
      %p177 = scmp.lt.s32.totalorder %s14, 2
      // Predicated region
      $region29: #{tpu_custom_call.1} parent=5 // pred_check
        %p178 = pneg %p177
      $region30: #{tpu_custom_call.1} parent=5 // pred_check_branch
        %180 = sbr.rel (%p178) target = $region32
      $region31: #{tpu_custom_call.1} parent=5 // pred_region
        // Predicated region
        $region33: #{tpu_custom_call.1} parent=31 // pred_check
          %p181 = pneg %p34
        $region34: #{tpu_custom_call.1} parent=31 // pred_check_branch
          %183 = sbr.rel (%p181) target = $region36
        $region35: #{tpu_custom_call.1} parent=31 // pred_region
          %p184 = scmp.lt.s32.totalorder %s14, 1
          %s185 = scalar_select %p184, %s14, 1
          %s186 = smul.addr %s185, 2
          %s187 = smul.addr %s186, 4
          %s188 = scalar_lea.vmem %s0, %s187
        $region36: #{tpu_custom_call.1} parent=31 // pred_fallthru
          _
      $region32: #{tpu_custom_call.1} parent=5 // pred_fallthru
        _
      %p189 = scmp.le.s32.totalorder 1, %s14
      %p190 = scmp.lt.s32.totalorder %s14, 3
      %p191 = pnand %p189, %p190
      %p192 = pneg %p191
      // Predicated region
      $region37: #{tpu_custom_call.1} parent=5 // pred_check
        _
      $region38: #{tpu_custom_call.1} parent=5 // pred_check_branch
        %194 = sbr.rel (%p191) target = $region40
      $region39: #{tpu_custom_call.1} parent=5 // pred_region
        %s195 = ssub.s32 %s14, 1
        %p196 = scmp.lt.s32.totalorder %s19, 1
        %s197 = scalar_select %p196, %s19, 1
        %s198 = smul.addr %s197, 2
        %s199 = smul.addr %s198, 4
        %s200 = scalar_lea.vmem %s0, %s199
        %p201 = pneg %p40
        %p202 = pneg %p37
        %p203 = pneg %p61
        %p204 = pneg %p58
        %p205 = pneg %p82
        %p206 = pneg %p79
        %p207 = pneg %p103
        %p208 = pneg %p100
        %p209 = pneg %p124
        %p210 = pneg %p121
        %p211 = pneg %p150
        %p212 = pneg %p147
        %s213 = sand.u32 %s137, 1
        %s214 = scalar_lea.sflag [#allocation3], %s213
        %s215 = sand.u32 %s137, 1
        %s216 = smul.addr %s215, 64
        %s217 = scalar_lea.vmem [#allocation2], %s216
        %p218 = scmp.lt.s32.totalorder %s19, 1
        %s219 = scalar_select %p218, %s19, 1
        %s220 = smul.addr %s219, 2
        %s221 = smul.addr %s220, 4
        %s222 = scalar_lea.vmem %s0, %s221
        %v224 = vld [vmem:[%s1] sm:$0xf]
        %v225 = vld [vmem:[%s1 + $0x4] sm:$0xf]
        %v226 = vld [vmem:[%s1 + $0x8] sm:$0xf]
        %v227 = vld [vmem:[%s1 + $0xc] sm:$0xf]
        %v228 = vld [vmem:[%s2] sm:$0xf]
        %v229 = vld [vmem:[%s2 + $0x4] sm:$0xf]
        %v230 = vld [vmem:[%s2 + $0x8] sm:$0xf]
        %v231 = vld [vmem:[%s2 + $0xc] sm:$0xf]
        %v232 = vld [vmem:[%s3] sm:$0xf]
        %v233 = vld [vmem:[%s3 + $0x4] sm:$0xf]
        %v234 = vld [vmem:[%s3 + $0x8] sm:$0xf]
        %v235 = vld [vmem:[%s3 + $0xc] sm:$0xf]
        %v236 = vld [vmem:[%s4] sm:$0xff]
        %v237 = vld [vmem:[%s4 + $0x8] sm:$0xff]
        %v238 = vld [vmem:[%s4 + $0x10] sm:$0xff]
        %v239 = vld [vmem:[%s4 + $0x18] sm:$0xff]
        %v240 = vld [vmem:[%s222] sm:$0xff]
        %v242 = vcombine.high %v240, %v240
        %v244 = vpack.c.bf16 %v240, %v240
        %v245 = vpack.c.bf16 %v242, %v242
        %v250 = vunpack.c.l.b16 %v224
        %v251 = vunpack.c.l.b16 %v225
        %v252 = vunpack.c.l.b16 %v226
        %v253 = vunpack.c.l.b16 %v227
        %v254 = vpack.c.b16 %v251, %v250
        %v255 = vpack.c.b16 %v253, %v252
        %vm256 = vcmask 31744
        %v258 = vsel %vm256, %v254, 0
        %v261 = vsel %vm256, %v255, 0
        %vm263 = vcmask 1041408
        %v265 = vsel %vm263, %v244, 0
        %v268 = vsel %vm263, %v245, 0
        %270 = vmatprep.subr.bf16.mxu0 %v268
        %271 = vmatpush1.bf16.msra.mxu0 %v265
        %272 = vmatprep.subr.bf16.mxu0 0
        %273 = vmatpush1.bf16.msra.mxu0 0
        %274 = vmatprep.subr.bf16.mxu0 0
        %275 = vmatpush1.bf16.msra.mxu0 0
        %276 = vmatprep.subr.bf16.mxu0 0
        %277 = vmatpush1.bf16.msra.mxu0 0
        %278 = vmatprep.subr.bf16.mxu0 0
        %279 = vmatpush1.bf16.msra.mxu0 0
        %280 = vmatprep.subr.bf16.mxu0 0
        %281 = vmatpush1.bf16.msra.mxu0 0
        %282 = vmatprep.subr.bf16.mxu0 0
        %283 = vmatpush1.bf16.msra.mxu0 0
        %284 = vmatprep.subr.bf16.mxu0 0
        %285 = vmatpush1.bf16.msra.mxu0 0
        %286 = vmatprep.subr.bf16.mxu0 0
        %287 = vmatpush1.bf16.msra.mxu0 0
        %288 = vmatprep.subr.bf16.mxu0 0
        %289 = vmatpush1.bf16.msra.mxu0 0
        %290 = vmatprep.subr.bf16.mxu0 0
        %291 = vmatpush1.bf16.msra.mxu0 0
        %292 = vmatprep.subr.bf16.mxu0 0
        %293 = vmatpush1.bf16.msra.mxu0 0
        %294 = vmatprep.subr.bf16.mxu0 0
        %295 = vmatpush1.bf16.msra.mxu0 0
        %296 = vmatprep.subr.bf16.mxu0 0
        %297 = vmatpush1.bf16.msra.mxu0 0
        %298 = vmatprep.subr.bf16.mxu0 0
        %299 = vmatpush1.bf16.msra.mxu0 0
        %300 = vmatprep.subr.bf16.mxu0 0
        %301 = vmatpush1.bf16.msra.mxu0 0
        %302 = vmatprep.mubr.bf16.mxu0 0
        %303 = vmatmul.mubr.bf16.gmra.mrb[0].mxu0 %v258
        %v304 = vpop.f32.mrb[0].mxu0
        %v305 = vadd.f32 0.0, %v304
        %v306 = vpop.f32.mrb[0].mxu0
        %v307 = vadd.f32 0.0, %v306
        %v308 = vpop.f32.mrb[0].mxu0
        %v309 = vadd.f32 0.0, %v308
        %v310 = vpop.f32.mrb[0].mxu0
        %v311 = vadd.f32 0.0, %v310
        %312 = vmatprep.mubr.bf16.mxu0 0
        %313 = vmatmul.mubr.bf16.gmra.mrb[0].mxu0 %v261
        %v314 = vpop.f32.mrb[0].mxu0
        %v315 = vadd.f32 0.0, %v314
        %v316 = vpop.f32.mrb[0].mxu0
        %v317 = vadd.f32 0.0, %v316
        %v318 = vpop.f32.mrb[0].mxu0
        %v319 = vadd.f32 0.0, %v318
        %v320 = vpop.f32.mrb[0].mxu0
        %v321 = vadd.f32 0.0, %v320
        %322 = vdwg.mxu0
        %324 = vset.pattern.permute.xlu0 0
        %325 = vperm.xlu0 %324, %v305
        %v326 = vpop.permute.xlu0 %325
        %329 = vset.pattern.permute.xlu0 0
        %330 = vperm.xlu0 %329, %v309
        %v331 = vpop.permute.xlu0 %330
        %334 = vset.pattern.permute.xlu0 0
        %335 = vperm.xlu0 %334, %v315
        %v336 = vpop.permute.xlu0 %335
        %339 = vset.pattern.permute.xlu0 0
        %340 = vperm.xlu0 %339, %v319
        %v341 = vpop.permute.xlu0 %340
        %v343 = vsub.f32 %v305, %v326
        %v344 = vsub.f32 %v307, %v326
        %v345 = vsub.f32 %v309, %v331
        %v346 = vsub.f32 %v311, %v331
        %v347 = vsub.f32 %v315, %v336
        %v348 = vsub.f32 %v317, %v336
        %v349 = vsub.f32 %v319, %v341
        %v350 = vsub.f32 %v321, %v341
        %v351 = vadd.f32 %v343, %v344
        %352 = vadd.xlane.f32.xlu0 %v351
        %v353 = vpop.xlane.xlu0 %352
        %v354 = vadd.f32 %v345, %v346
        %355 = vadd.xlane.f32.xlu0 %v354
        %v356 = vpop.xlane.xlu0 %355
        %v357 = vadd.f32 %v347, %v348
        %358 = vadd.xlane.f32.xlu0 %v357
        %v359 = vpop.xlane.xlu0 %358
        %v360 = vadd.f32 %v349, %v350
        %361 = vadd.xlane.f32.xlu0 %v360
        %v362 = vpop.xlane.xlu0 %361
        %v363 = vmul.f32 %v343, %v343
        %v364 = vmul.f32 %v344, %v344
        %v365 = vmul.f32 %v345, %v345
        %v366 = vmul.f32 %v346, %v346
        %v367 = vmul.f32 %v347, %v347
        %v368 = vmul.f32 %v348, %v348
        %v369 = vmul.f32 %v349, %v349
        %v370 = vmul.f32 %v350, %v350
        %v371 = vadd.f32 %v363, %v364
        %372 = vadd.xlane.f32.xlu0 %v371
        %v373 = vpop.xlane.xlu0 %372
        %v374 = vadd.f32 %v365, %v366
        %375 = vadd.xlane.f32.xlu0 %v374
        %v376 = vpop.xlane.xlu0 %375
        %v377 = vadd.f32 %v367, %v368
        %378 = vadd.xlane.f32.xlu0 %v377
        %v379 = vpop.xlane.xlu0 %378
        %v380 = vadd.f32 %v369, %v370
        %381 = vadd.xlane.f32.xlu0 %v380
        %v382 = vpop.xlane.xlu0 %381
        %v383 = vmul.f32 %v353, 0.00390625
        %v384 = vmul.f32 %v356, 0.00390625
        %v385 = vmul.f32 %v359, 0.00390625
        %v386 = vmul.f32 %v362, 0.00390625
        %v387 = vmul.f32 %v373, 0.00390625
        %v388 = vmul.f32 %v376, 0.00390625
        %v389 = vmul.f32 %v379, 0.00390625
        %v390 = vmul.f32 %v382, 0.00390625
        %v391 = vmul.f32 %v383, %v383
        %v392 = vmul.f32 %v384, %v384
        %v393 = vmul.f32 %v385, %v385
        %v394 = vmul.f32 %v386, %v386
        %v395 = vsub.f32 %v387, %v391
        %v396 = vsub.f32 %v388, %v392
        %v397 = vsub.f32 %v389, %v393
        %v398 = vsub.f32 %v390, %v394
        %v399 = vmax.f32 %v395, 0.0
        %v400 = vmax.f32 %v396, 0.0
        %v401 = vmax.f32 %v397, 0.0
        %v402 = vmax.f32 %v398, 0.0
        %v403 = vsub.f32 %v343, %v383
        %v404 = vsub.f32 %v344, %v383
        %v405 = vsub.f32 %v345, %v384
        %v406 = vsub.f32 %v346, %v384
        %v407 = vsub.f32 %v347, %v385
        %v408 = vsub.f32 %v348, %v385
        %v409 = vsub.f32 %v349, %v386
        %v410 = vsub.f32 %v350, %v386
        %v411 = vadd.f32 %v399, 1e-05
        %v412 = vadd.f32 %v400, 1e-05
        %v413 = vadd.f32 %v401, 1e-05
        %v414 = vadd.f32 %v402, 1e-05
        %v415 = vrsqrt.pop %v411
        %v416 = vrsqrt.pop %v412
        %v417 = vrsqrt.pop %v413
        %v418 = vrsqrt.pop %v414
        %v419 = vmul.f32 %v403, %v415
        %v420 = vmul.f32 %v404, %v415
        %v421 = vmul.f32 %v405, %v416
        %v422 = vmul.f32 %v406, %v416
        %v423 = vmul.f32 %v407, %v417
        %v424 = vmul.f32 %v408, %v417
        %v425 = vmul.f32 %v409, %v418
        %v426 = vmul.f32 %v410, %v418
        %v427 = vmax.f32 %v419, 0.0
        %v428 = vmax.f32 %v420, 0.0
        %v429 = vmax.f32 %v421, 0.0
        %v430 = vmax.f32 %v422, 0.0
        %v431 = vmax.f32 %v423, 0.0
        %v432 = vmax.f32 %v424, 0.0
        %v433 = vmax.f32 %v425, 0.0
        %v434 = vmax.f32 %v426, 0.0
        %v435 = vpack.c.bf16 %v429, %v427
        %v436 = vpack.c.bf16 %v430, %v428
        %v437 = vpack.c.bf16 %v433, %v431
        %v438 = vpack.c.bf16 %v434, %v432
        %v443 = vunpack.c.l.b16 %v228
        %v444 = vunpack.c.l.b16 %v229
        %v445 = vunpack.c.l.b16 %v230
        %v446 = vunpack.c.l.b16 %v231
        %v447 = vpack.c.b16 %v444, %v443
        %v448 = vpack.c.b16 %v446, %v445
        %vm449 = vcmask 261120
        %v451 = vsel %vm449, %v447, 0
        %v454 = vsel %vm449, %v448, 0
        %456 = vmatprep.subr.bf16.mxu0 %v436
        %457 = vmatpush1.bf16.msra.mxu0 %v435
        %458 = vmatprep.subr.bf16.mxu0 %v438
        %459 = vmatpush1.bf16.msra.mxu0 %v437
        %460 = vmatprep.subr.bf16.mxu0 0
        %461 = vmatpush1.bf16.msra.mxu0 0
        %462 = vmatprep.subr.bf16.mxu0 0
        %463 = vmatpush1.bf16.msra.mxu0 0
        %464 = vmatprep.subr.bf16.mxu0 0
        %465 = vmatpush1.bf16.msra.mxu0 0
        %466 = vmatprep.subr.bf16.mxu0 0
        %467 = vmatpush1.bf16.msra.mxu0 0
        %468 = vmatprep.subr.bf16.mxu0 0
        %469 = vmatpush1.bf16.msra.mxu0 0
        %470 = vmatprep.subr.bf16.mxu0 0
        %471 = vmatpush1.bf16.msra.mxu0 0
        %472 = vmatprep.subr.bf16.mxu0 0
        %473 = vmatpush1.bf16.msra.mxu0 0
        %474 = vmatprep.subr.bf16.mxu0 0
        %475 = vmatpush1.bf16.msra.mxu0 0
        %476 = vmatprep.subr.bf16.mxu0 0
        %477 = vmatpush1.bf16.msra.mxu0 0
        %478 = vmatprep.subr.bf16.mxu0 0
        %479 = vmatpush1.bf16.msra.mxu0 0
        %480 = vmatprep.subr.bf16.mxu0 0
        %481 = vmatpush1.bf16.msra.mxu0 0
        %482 = vmatprep.subr.bf16.mxu0 0
        %483 = vmatpush1.bf16.msra.mxu0 0
        %484 = vmatprep.subr.bf16.mxu0 0
        %485 = vmatpush1.bf16.msra.mxu0 0
        %486 = vmatprep.subr.bf16.mxu0 0
        %487 = vmatpush1.bf16.msra.mxu0 0
        %488 = vmatprep.mubr.bf16.mxu0 0
        %489 = vmatmul.mubr.bf16.gmra.mrb[0].mxu0 %v451
        %v490 = vpop.f32.mrb[0].mxu0
        %v491 = vadd.f32 0.0, %v490
        %v492 = vpop.f32.mrb[0].mxu0
        %v493 = vadd.f32 0.0, %v492
        %v494 = vpop.f32.mrb[0].mxu0
        %v495 = vadd.f32 0.0, %v494
        %v496 = vpop.f32.mrb[0].mxu0
        %v497 = vadd.f32 0.0, %v496
        %498 = vmatprep.mubr.bf16.mxu0 0
        %499 = vmatmul.mubr.bf16.gmra.mrb[0].mxu0 %v454
        %v500 = vpop.f32.mrb[0].mxu0
        %v501 = vadd.f32 0.0, %v500
        %v502 = vpop.f32.mrb[0].mxu0
        %v503 = vadd.f32 0.0, %v502
        %v504 = vpop.f32.mrb[0].mxu0
        %v505 = vadd.f32 0.0, %v504
        %v506 = vpop.f32.mrb[0].mxu0
        %v507 = vadd.f32 0.0, %v506
        %508 = vdwg.mxu0
        %510 = vset.pattern.permute.xlu0 0
        %511 = vperm.xlu0 %510, %v491
        %v512 = vpop.permute.xlu0 %511
        %515 = vset.pattern.permute.xlu0 0
        %516 = vperm.xlu0 %515, %v495
        %v517 = vpop.permute.xlu0 %516
        %520 = vset.pattern.permute.xlu0 0
        %521 = vperm.xlu0 %520, %v501
        %v522 = vpop.permute.xlu0 %521
        %525 = vset.pattern.permute.xlu0 0
        %526 = vperm.xlu0 %525, %v505
        %v527 = vpop.permute.xlu0 %526
        %v529 = vsub.f32 %v491, %v512
        %v530 = vsub.f32 %v493, %v512
        %v531 = vsub.f32 %v495, %v517
        %v532 = vsub.f32 %v497, %v517
        %v533 = vsub.f32 %v501, %v522
        %v534 = vsub.f32 %v503, %v522
        %v535 = vsub.f32 %v505, %v527
        %v536 = vsub.f32 %v507, %v527
        %v537 = vadd.f32 %v529, %v530
        %538 = vadd.xlane.f32.xlu0 %v537
        %v539 = vpop.xlane.xlu0 %538
        %v540 = vadd.f32 %v531, %v532
        %541 = vadd.xlane.f32.xlu0 %v540
        %v542 = vpop.xlane.xlu0 %541
        %v543 = vadd.f32 %v533, %v534
        %544 = vadd.xlane.f32.xlu0 %v543
        %v545 = vpop.xlane.xlu0 %544
        %v546 = vadd.f32 %v535, %v536
        %547 = vadd.xlane.f32.xlu0 %v546
        %v548 = vpop.xlane.xlu0 %547
        %v549 = vmul.f32 %v529, %v529
        %v550 = vmul.f32 %v530, %v530
        %v551 = vmul.f32 %v531, %v531
        %v552 = vmul.f32 %v532, %v532
        %v553 = vmul.f32 %v533, %v533
        %v554 = vmul.f32 %v534, %v534
        %v555 = vmul.f32 %v535, %v535
        %v556 = vmul.f32 %v536, %v536
        %v557 = vadd.f32 %v549, %v550
        %558 = vadd.xlane.f32.xlu0 %v557
        %v559 = vpop.xlane.xlu0 %558
        %v560 = vadd.f32 %v551, %v552
        %561 = vadd.xlane.f32.xlu0 %v560
        %v562 = vpop.xlane.xlu0 %561
        %v563 = vadd.f32 %v553, %v554
        %564 = vadd.xlane.f32.xlu0 %v563
        %v565 = vpop.xlane.xlu0 %564
        %v566 = vadd.f32 %v555, %v556
        %567 = vadd.xlane.f32.xlu0 %v566
        %v568 = vpop.xlane.xlu0 %567
        %v569 = vmul.f32 %v539, 0.00390625
        %v570 = vmul.f32 %v542, 0.00390625
        %v571 = vmul.f32 %v545, 0.00390625
        %v572 = vmul.f32 %v548, 0.00390625
        %v573 = vmul.f32 %v559, 0.00390625
        %v574 = vmul.f32 %v562, 0.00390625
        %v575 = vmul.f32 %v565, 0.00390625
        %v576 = vmul.f32 %v568, 0.00390625
        %v577 = vmul.f32 %v569, %v569
        %v578 = vmul.f32 %v570, %v570
        %v579 = vmul.f32 %v571, %v571
        %v580 = vmul.f32 %v572, %v572
        %v581 = vsub.f32 %v573, %v577
        %v582 = vsub.f32 %v574, %v578
        %v583 = vsub.f32 %v575, %v579
        %v584 = vsub.f32 %v576, %v580
        %v585 = vmax.f32 %v581, 0.0
        %v586 = vmax.f32 %v582, 0.0
        %v587 = vmax.f32 %v583, 0.0
        %v588 = vmax.f32 %v584, 0.0
        %v589 = vsub.f32 %v529, %v569
        %v590 = vsub.f32 %v530, %v569
        %v591 = vsub.f32 %v531, %v570
        %v592 = vsub.f32 %v532, %v570
        %v593 = vsub.f32 %v533, %v571
        %v594 = vsub.f32 %v534, %v571
        %v595 = vsub.f32 %v535, %v572
        %v596 = vsub.f32 %v536, %v572
        %v597 = vadd.f32 %v585, 1e-05
        %v598 = vadd.f32 %v586, 1e-05
        %v599 = vadd.f32 %v587, 1e-05
        %v600 = vadd.f32 %v588, 1e-05
        %v601 = vrsqrt.pop %v597
        %v602 = vrsqrt.pop %v598
        %v603 = vrsqrt.pop %v599
        %v604 = vrsqrt.pop %v600
        %v605 = vmul.f32 %v589, %v601
        %v606 = vmul.f32 %v590, %v601
        %v607 = vmul.f32 %v591, %v602
        %v608 = vmul.f32 %v592, %v602
        %v609 = vmul.f32 %v593, %v603
        %v610 = vmul.f32 %v594, %v603
        %v611 = vmul.f32 %v595, %v604
        %v612 = vmul.f32 %v596, %v604
        %v613 = vmax.f32 %v605, 0.0
        %v614 = vmax.f32 %v606, 0.0
        %v615 = vmax.f32 %v607, 0.0
        %v616 = vmax.f32 %v608, 0.0
        %v617 = vmax.f32 %v609, 0.0
        %v618 = vmax.f32 %v610, 0.0
        %v619 = vmax.f32 %v611, 0.0
        %v620 = vmax.f32 %v612, 0.0
        %v621 = vpack.c.bf16 %v615, %v613
        %v622 = vpack.c.bf16 %v616, %v614
        %v623 = vpack.c.bf16 %v619, %v617
        %v624 = vpack.c.bf16 %v620, %v618
        %626 = vset.pattern.permute.xlu0 0
        %627 = vperm.xlu0 %626, %v236
        %v628 = vpop.permute.xlu0 %627
        %631 = vset.pattern.permute.xlu0 0
        %632 = vperm.xlu0 %631, %v237
        %v633 = vpop.permute.xlu0 %632
        %636 = vset.pattern.permute.xlu0 0
        %637 = vperm.xlu0 %636, %v238
        %v638 = vpop.permute.xlu0 %637
        %641 = vset.pattern.permute.xlu0 0
        %642 = vperm.xlu0 %641, %v239
        %v643 = vpop.permute.xlu0 %642
        %v649 = vunpack.c.l.b16 %v232
        %v650 = vunpack.c.l.b16 %v233
        %v651 = vunpack.c.l.b16 %v234
        %v652 = vunpack.c.l.b16 %v235
        %v653 = vpack.c.b16 %v650, %v649
        %v654 = vpack.c.b16 %v652, %v651
        %v656 = vsel %vm449, %v653, 0
        %v659 = vsel %vm449, %v654, 0
        %661 = vmatprep.subr.bf16.mxu0 %v622
        %662 = vmatpush1.bf16.msra.mxu0 %v621
        %663 = vmatprep.subr.bf16.mxu0 %v624
        %664 = vmatpush1.bf16.msra.mxu0 %v623
        %665 = vmatprep.subr.bf16.mxu0 0
        %666 = vmatpush1.bf16.msra.mxu0 0
        %667 = vmatprep.subr.bf16.mxu0 0
        %668 = vmatpush1.bf16.msra.mxu0 0
        %669 = vmatprep.subr.bf16.mxu0 0
        %670 = vmatpush1.bf16.msra.mxu0 0
        %671 = vmatprep.subr.bf16.mxu0 0
        %672 = vmatpush1.bf16.msra.mxu0 0
        %673 = vmatprep.subr.bf16.mxu0 0
        %674 = vmatpush1.bf16.msra.mxu0 0
        %675 = vmatprep.subr.bf16.mxu0 0
        %676 = vmatpush1.bf16.msra.mxu0 0
        %677 = vmatprep.subr.bf16.mxu0 0
        %678 = vmatpush1.bf16.msra.mxu0 0
        %679 = vmatprep.subr.bf16.mxu0 0
        %680 = vmatpush1.bf16.msra.mxu0 0
        %681 = vmatprep.subr.bf16.mxu0 0
        %682 = vmatpush1.bf16.msra.mxu0 0
        %683 = vmatprep.subr.bf16.mxu0 0
        %684 = vmatpush1.bf16.msra.mxu0 0
        %685 = vmatprep.subr.bf16.mxu0 0
        %686 = vmatpush1.bf16.msra.mxu0 0
        %687 = vmatprep.subr.bf16.mxu0 0
        %688 = vmatpush1.bf16.msra.mxu0 0
        %689 = vmatprep.subr.bf16.mxu0 0
        %690 = vmatpush1.bf16.msra.mxu0 0
        %691 = vmatprep.subr.bf16.mxu0 0
        %692 = vmatpush1.bf16.msra.mxu0 0
        %693 = vmatprep.mubr.bf16.mxu0 0
        %694 = vmatmul.mubr.bf16.gmra.mrb[0].mxu0 %v656
        %v695 = vpop.f32.mrb[0].mxu0
        %v696 = vadd.f32 %v628, %v695
        %v697 = vpop.f32.mrb[0].mxu0
        %v698 = vadd.f32 %v628, %v697
        %v699 = vpop.f32.mrb[0].mxu0
        %v700 = vadd.f32 %v633, %v699
        %v701 = vpop.f32.mrb[0].mxu0
        %v702 = vadd.f32 %v633, %v701
        %703 = vmatprep.mubr.bf16.mxu0 0
        %704 = vmatmul.mubr.bf16.gmra.mrb[0].mxu0 %v659
        %v705 = vpop.f32.mrb[0].mxu0
        %v706 = vadd.f32 %v638, %v705
        %v707 = vpop.f32.mrb[0].mxu0
        %v708 = vadd.f32 %v638, %v707
        %v709 = vpop.f32.mrb[0].mxu0
        %v710 = vadd.f32 %v643, %v709
        %v711 = vpop.f32.mrb[0].mxu0
        %v712 = vadd.f32 %v643, %v711
        %713 = vdwg.mxu0
        %714 = vst [vmem:[%s217] sm:$0xff] %v696
        %715 = vst [vmem:[%s217 + $0x8] sm:$0xff] %v698
        %716 = vst [vmem:[%s217 + $0x10] sm:$0xff] %v700
        %717 = vst [vmem:[%s217 + $0x18] sm:$0xff] %v702
        %718 = vst [vmem:[%s217 + $0x20] sm:$0xff] %v706
        %719 = vst [vmem:[%s217 + $0x28] sm:$0xff] %v708
        %720 = vst [vmem:[%s217 + $0x30] sm:$0xff] %v710
        %721 = vst [vmem:[%s217 + $0x38] sm:$0xff] %v712
        %s722 = sand.u32 %s137, 1
        %s723 = scalar_lea.sflag [#allocation3], %s722
        %s724 = sand.u32 %s137, 1
        %s725 = smul.addr %s724, 64
        %s726 = scalar_lea.vmem [#allocation2], %s725
        // Predicated region
        $region41: #{tpu_custom_call.1} parent=39 // pred_check
          %p727 = pneg %p147
        $region42: #{tpu_custom_call.1} parent=39 // pred_check_branch
          %729 = sbr.rel (%p727) target = $region44
        $region43: #{tpu_custom_call.1} parent=39 // pred_region
          %s731 = ssub.s32 1024, 1024
          %732 = vsyncadd %s723, %s731
          %s733 = smul.addr %s19, 8
          %s734 = smul.addr %s733, 128
          %s735 = scalar_lea.hbm %s5, %s734
          %s736 = sshll.u32 %s726, 4
          %s737 = int_to_ptr.vmem [resolvable:$true] %s736
          %742 = dma.vmem_to_hbm [thread:$0]  %s737, 1024, %s735, %s723, 256, 256, 16
        $region44: #{tpu_custom_call.1} parent=39 // pred_fallthru
          _
      $region40: #{tpu_custom_call.1} parent=5 // pred_fallthru
        _
      %p743 = scmp.le.s32.totalorder 2, %s14
      // Predicated region
      $region45: #{tpu_custom_call.1} parent=5 // pred_check
        %p744 = pneg %p743
      $region46: #{tpu_custom_call.1} parent=5 // pred_check_branch
        %746 = sbr.rel (%p744) target = $region48
      $region47: #{tpu_custom_call.1} parent=5 // pred_region
        %s747 = ssub.s32 %s14, 2
        // Predicated region
        $region49: #{tpu_custom_call.1} parent=47 // pred_check
          %p748 = pneg %p153
        $region50: #{tpu_custom_call.1} parent=47 // pred_check_branch
          %750 = sbr.rel (%p748) target = $region52
        $region51: #{tpu_custom_call.1} parent=47 // pred_region
          %s751 = sand.u32 %s138, 1
          %s752 = scalar_lea.sflag [#allocation3], %s751
          %s753 = sand.u32 %s138, 1
          %s754 = smul.addr %s753, 64
          %s755 = scalar_lea.vmem [#allocation2], %s754
          %756 = dma.done %s752, 1024
        $region52: #{tpu_custom_call.1} parent=47 // pred_fallthru
          _
      $region48: #{tpu_custom_call.1} parent=5 // pred_fallthru
        _
    $region6: #{tpu_custom_call.1} parent=1 // loop_footer
      %s18 = sadd.s32 1, %s14
    $region7: #{tpu_custom_call.1} parent=1 // loop_footer_branch
      %13 = sbr.rel target = $region3
    $region8: #{tpu_custom_call.1} parent=1 // loop_exit
      _
    %757 = vsyncpa [#allocation3], 1
    %s758 = scalar_lea.sflag [#allocation3], 1
    %759 = vsyncpa %s758, 1

</llo_original>
